<compile_context>
chip_gen: v7x
topology: tpu7x:2x2x1
jax: 0.10.0
libtpu: 0.0.40
codegen_flags: <defaults>
</compile_context>

<pallas_src>
import jax
import jax.numpy as jnp
from jax.experimental import pallas as pl
from jax.experimental.pallas import tpu as pltpu


def _hbm_to_hbm_copy_kernel(x_hbm_ref, o_hbm_ref, copy_sem):
    # Single whole-buffer DMA: HBM -> HBM, no VMEM staging, no vector ops.
    cp = pltpu.make_async_copy(x_hbm_ref, o_hbm_ref, copy_sem)
    cp.start()
    cp.wait()


def _pallas_materialized_copy(x):
    """Materialize a fresh copy of `x` via one HBM->HBM DMA in a Pallas kernel."""
    total_bytes = int(x.size) * jnp.dtype(x.dtype).itemsize
    return pl.pallas_call(
        _hbm_to_hbm_copy_kernel,
        out_shape=jax.ShapeDtypeStruct(x.shape, x.dtype),
        # Raw HBM refs on both sides: no BlockSpec pipelining, no VMEM tiles.
        in_specs=[pl.BlockSpec(memory_space=pl.ANY)],
        out_specs=pl.BlockSpec(memory_space=pl.ANY),
        scratch_shapes=[pltpu.SemaphoreType.DMA],
        cost_estimate=pl.CostEstimate(
            flops=0, transcendentals=0, bytes_accessed=2 * total_bytes),
    )(x)


class View:
    """JAX/Pallas equivalent of the PyTorch View module.

    forward(x) = x.view((-1, *shape)).  By default this is a metadata-only
    reshape (exactly like torch's .view, which moves no bytes).  Pass
    materialize=True to force a fresh output buffer produced by a Pallas
    HBM->HBM DMA copy kernel.
    """

    def __init__(self, shape, materialize=False):
        self.shape = tuple(int(s) for s in shape)
        self.materialize = materialize

    def __call__(self, x):
        out_shape = (-1,) + self.shape
        if not self.materialize or int(x.size) == 0:
            # Metadata-only: identical semantics (and bytes) to x.view(...).
            return jnp.reshape(x, out_shape)
        copied = _pallas_materialized_copy(x)
        return jnp.reshape(copied, out_shape)


if __name__ == "__main__":
    key = jax.random.PRNGKey(0)
    # Small input consistent with a conv-style NCHW tensor: [2, 4, 16, 16].
    x = jax.random.normal(key, (2, 4, 16, 16), dtype=jnp.float32)

    # Default (free) path: pure reshape, matching torch's x.view((-1, *shape)).
    view = View((4 * 16 * 16,))
    out = jax.block_until_ready(view(x))
    expected = jnp.reshape(x, (-1, 4 * 16 * 16))
    assert out.shape == expected.shape, (out.shape, expected.shape)
    assert out.dtype == expected.dtype
    assert bool(jnp.all(out == expected))

    # Opt-in materialized path: exercises the Pallas HBM->HBM DMA kernel.
    view_mat = View((4 * 16 * 16,), materialize=True)
    out_m = jax.block_until_ready(view_mat(x))
    assert out_m.shape == expected.shape
    assert out_m.dtype == expected.dtype
    assert bool(jnp.all(out_m == expected))

    # Multi-dim target shape through the Pallas kernel: (2, 16, 64).
    view2 = View((16, 64), materialize=True)
    out2 = jax.block_until_ready(view2(x))
    expected2 = jnp.reshape(x, (-1, 16, 64))
    assert out2.shape == expected2.shape
    assert bool(jnp.all(out2 == expected2))

    # Ragged (non-multiple-of-128) size through the Pallas kernel: the
    # HBM->HBM DMA has no (8,128) VMEM-block constraint, so no special casing.
    x4 = jax.random.normal(jax.random.PRNGKey(2), (2, 3, 5, 7), jnp.float32)
    out4 = jax.block_until_ready(View((3 * 5 * 7,), materialize=True)(x4))
    expected4 = jnp.reshape(x4, (-1, 3 * 5 * 7))
    assert out4.shape == expected4.shape
    assert bool(jnp.all(out4 == expected4))

    print("KERNEL_OK")
</pallas_src>

<mosaic_0001>
module attributes {stable_mosaic.version = 11 : i64} {
  func.func @_hbm_to_hbm_copy_kernel(%arg0: memref<2x4x16x16xf32, #tpu.memory_space<any>>, %arg1: memref<2x4x16x16xf32, #tpu.memory_space<any>>, %arg2: memref<!tpu.dma_semaphore, #tpu.memory_space<semaphore_mem>>) attributes {dimension_semantics = [], scalar_prefetch = 0 : i64, scratch_operands = 1 : i64, tpu.core_type = #tpu.core_type<tc>} {
    tpu.enqueue_dma source(%arg0 : memref<2x4x16x16xf32, #tpu.memory_space<any>>) target(%arg1 : memref<2x4x16x16xf32, #tpu.memory_space<any>>) target_semaphore(%arg2 : memref<!tpu.dma_semaphore, #tpu.memory_space<semaphore_mem>>)
    tpu.wait_dma2 semaphore(%arg2 : memref<!tpu.dma_semaphore, #tpu.memory_space<semaphore_mem>>) src(%arg0 : memref<2x4x16x16xf32, #tpu.memory_space<any>>) dst(%arg1 : memref<2x4x16x16xf32, #tpu.memory_space<any>>)
    return
  }
}

</mosaic_0001>

<llo_original>
// kernel: tpu_custom_call.1
$region0: #{tpu_custom_call.1}
  #allocation0 [shape = 'u32[]', space=smem, size = 0x4, offset = 0x4, fixed_abs, tag = 'smem constant byte address 0x4 - core index']
  #allocation1 [shape = 'u32[144,128]{1,0:T(1,128)}', space=vmem, size = 0x12000, scoped, tag = 'internal scratch']
  #allocation2 [shape = 's32[1]{0}', space=sflag, size = 0x4, scoped, tag = 'scratch operand']
  #allocation3 [shape = 's32[]', space=sflag, size = 0x4, offset = 0, fixed_abs, tag = 'sflag constant byte address 0x0 - dummy sync flag']
  #allocation4 [shape = 'u32[0]{0}', space=smem, size = 0, offset = 0, fixed_abs, tag = 'smem constant byte address 0x0 - null']
  %s0 = inlined_call_operand.hbm [shape: f32[2,4,16,16], index: 0, kind: input, shape index: {}]
  %s1 = inlined_call_operand.hbm [shape: f32[2,4,16,16], index: 1, kind: output, shape index: {}]
  %s2 = sld [smem:[#allocation0]]
  $region2: #{tpu_custom_call.1} parent=0
    _
  %s4 = ssub.s32 1, %s2
  %s5 = scalar_select 0, %s4, %s2
  %s7 = sshll.u32 1, 14
  %s8 = sxor.u32 4294967295, %s7
  %s11 = sshll.u32 3, 24
  %s12 = sxor.u32 4294967295, %s11
  %s13 = sand.u32 0, %s12
  %s15 = sor.u32 %s13, 0
  %18 = dma.general %s0, 2048, %s1, [#allocation2], [#allocation3], [#allocation4], %s15, 0
  %s19 = smul.u32 2, 4
  %s20 = smul.u32 %s19, 16
  %s21 = smul.u32 %s20, 1
  %s22 = sshll.u32 %s21, 4
  %23 = dma.done [#allocation2], %s22
  %24 = vsyncmov [#allocation2]
  %s25 = vpop.sfrf %24
  %p26 = scmp.eq.s32.totalorder %s25, 0
  %p27 = pneg %p26
  %29 = shalt.err (%p27)

</llo_original>
